<compile_context>
chip_gen: v7x
topology: tpu7x:2x2x1
jax: 0.10.0
libtpu: 0.0.40
codegen_flags: <defaults>
</compile_context>

<pallas_src>
import jax
import jax.numpy as jnp
from jax import lax
from jax.experimental import pallas as pl
from jax.experimental.pallas import tpu as pltpu


TEMPERATURE_SIZE = 60  # vocabulary size of the temperature embedding table


def t_embed_kernel(xm_ref, whi_ref, wmid_ref, wlo_ref, o_ref):
    """One (TL//k, k*D) output slab.

    xm_ref : (TL//k, k*F) f32   -- k logical rows packed along lanes
    w*_ref : (V, D) bf16        -- exact 3-term split of the f32 table
    o_ref  : (TL//k, k*D) f32   -- lane-dense output slab
    """
    v, d = whi_ref.shape
    rows = o_ref.shape[0]
    k = o_ref.shape[1] // d
    f = xm_ref.shape[1] // k

    xm = xm_ref[...]
    w_hi = whi_ref[...]
    w_mid = wmid_ref[...]
    w_lo = wlo_ref[...]

    iota_v = lax.broadcasted_iota(jnp.int32, (rows, v), 1)          # (rows, V)

    for j in range(k):  # k is a small static constant (<= 16)
        # x_mark.long()[:, :, 1] for the j-th packed row (truncation, like .long()).
        idx = xm[:, j * f + 1: j * f + 2].astype(jnp.int32)          # (rows, 1)
        # Exact one-hot (0/1 are exact in bf16). Out-of-range indices -> zero row
        # (torch would raise; the jnp reference clamps) -- same caveat as v1.
        onehot = (idx == iota_v).astype(jnp.bfloat16)                # (rows, V)
        # Three single-pass bf16 matmuls; hi+mid+lo reconstructs the f32 table
        # exactly (to ~2^-24 rel), and the one-hot gather introduces no rounding.
        out = jnp.dot(onehot, w_hi, preferred_element_type=jnp.float32)
        out = out + jnp.dot(onehot, w_mid, preferred_element_type=jnp.float32)
        out = out + jnp.dot(onehot, w_lo, preferred_element_type=jnp.float32)
        o_ref[:, j * d: (j + 1) * d] = out.astype(o_ref.dtype)       # (rows, D)


def _split_table_bf16(w):
    """Exact 3-term bf16 decomposition of an f32 table: hi + mid + lo ~= w (24 bits)."""
    w = w.astype(jnp.float32)
    hi = w.astype(jnp.bfloat16)
    r1 = w - hi.astype(jnp.float32)
    mid = r1.astype(jnp.bfloat16)
    r2 = r1 - mid.astype(jnp.float32)
    lo = r2.astype(jnp.bfloat16)
    return hi, mid, lo


def _plan_tiles(B, L, F, D, V, k, target_rows=1024):
    """Chip/VMEM-aware L-tile (logical rows), padded L, and vmem_limit_bytes."""
    align = 8 * k  # keeps TL//k a multiple of 8 (sublane constraint on the slab)

    try:
        cap = int(pltpu.get_tpu_info().vmem_capacity_bytes)
    except Exception:
        cap = 64 * 1024 * 1024  # conservative (v7x-sized) fallback
    budget = cap // 2           # leave headroom for the compiler / other buffers

    table_bytes = 2 * 3 * (V * D * 2)  # 3 bf16 tables, double-buffered by the pipeline
    # Per logical row: double-buffered input + output tiles plus in-kernel
    # intermediates (one-hot bf16, iota i32, f32 accumulator, loaded x).
    row_bytes = 2 * F * 4 + 2 * D * 4 + V * 6 + D * 4 + F * 4
    avail = budget - table_bytes - (4 << 20)
    max_rows = max(align, avail // row_bytes)

    tl = min(target_rows, max_rows)
    tl = max(align, (tl // align) * align)
    l_ceil = ((L + align - 1) // align) * align
    tl = min(tl, l_ceil)

    # v7x megacore: both grid axes are "parallel"; make sure there are >= 2 steps
    # so both TensorCores get work (near-neutral on single-TC v5e/v6e).
    def n_steps(t):
        return B * ((L + t - 1) // t)

    while n_steps(tl) < 2 and tl >= 2 * align:
        tl = max(align, ((tl // 2) // align) * align)

    lp = ((L + tl - 1) // tl) * tl
    footprint = table_bytes + tl * row_bytes
    vmem_limit = int(min(budget, max(32 << 20, 2 * footprint)))
    return tl, lp, vmem_limit


def t_embedding(x_mark, emb_weight):
    """Forward pass of T_Embedding (default embed_type -> nn.Embedding).

    x_mark:     (B, L, F) float32  (only feature column 1 is used, as in the module)
    emb_weight: (V=60, D) float32  embedding table
    returns:    (B, L, 1, D) float32
    """
    B, L, F = x_mark.shape
    V, D = emb_weight.shape

    # Lane-dense packing factor: pack k logical rows per output slab row so the
    # output last dim is exactly 128 lanes (skip when D is already lane-dense).
    if D < 128 and 128 % D == 0 and (128 // D) <= 16:
        k = 128 // D
    else:
        k = 1

    TL, Lp, vmem_limit = _plan_tiles(B, L, F, D, V, k)

    # Pad L to a multiple of TL (padded rows -> index 0, discarded afterwards),
    # then present x_mark in the k-packed layout (pure row-major XLA reshape).
    xm = x_mark
    if Lp != L:
        xm = jnp.pad(xm, ((0, 0), (0, Lp - L), (0, 0)))
    xm = xm.reshape(B, Lp // k, k * F)

    w_hi, w_mid, w_lo = _split_table_bf16(emb_weight)

    grid = (B, Lp // TL)
    table_spec = pl.BlockSpec((V, D), lambda b, j: (0, 0))  # grid-invariant, VMEM-resident

    out = pl.pallas_call(
        t_embed_kernel,
        out_shape=jax.ShapeDtypeStruct((B, Lp // k, k * D), emb_weight.dtype),
        grid=grid,
        in_specs=[
            # Column slice + cast fused in-kernel; batch dim squeezed, L tiled.
            pl.BlockSpec((pl.Squeezed(), TL // k, k * F), lambda b, j: (b, j, 0)),
            table_spec, table_spec, table_spec,
        ],
        out_specs=pl.BlockSpec((pl.Squeezed(), TL // k, k * D), lambda b, j: (b, j, 0)),
        compiler_params=pltpu.CompilerParams(
            dimension_semantics=("parallel", "parallel"),
            vmem_limit_bytes=vmem_limit,
        ),
        cost_estimate=pl.CostEstimate(
            flops=3 * 2 * B * Lp * V * D,
            transcendentals=0,
            bytes_accessed=4 * B * Lp * F + 6 * V * D + 4 * B * Lp * D,
        ),
    )(xm, w_hi, w_mid, w_lo)

    # Undo the lane packing / padding (row-major reshape + cheap slice), then add
    # the kept singleton dim: (B, L, 1) indices -> (B, L, 1, D), as in PyTorch.
    out = out.reshape(B, Lp, D)[:, :L]
    return out.reshape(B, L, 1, D)


if __name__ == "__main__":
    B, L, F = 2, 16, 4          # batch, seq_len, number of time-mark features
    D = 32                      # d_model
    V = TEMPERATURE_SIZE        # 60

    key = jax.random.PRNGKey(0)
    kx, kw = jax.random.split(key)

    # Time-mark features; column 1 carries the temperature index in [0, 60).
    x_mark = jax.random.uniform(
        kx, (B, L, F), dtype=jnp.float32, minval=0.0, maxval=float(V) - 1e-3)
    # nn.Embedding default weight init: N(0, 1).
    emb_weight = jax.random.normal(kw, (V, D), dtype=jnp.float32)

    out = t_embedding(x_mark, emb_weight)
    out = jax.block_until_ready(out)

    # Pure-JAX reference of the same forward pass.
    idx = x_mark[:, :, 1].astype(jnp.int32)          # x_mark.long()[:, :, 1]
    ref = emb_weight[idx][:, :, None, :]             # (B, L, 1, D)

    assert out.shape == (B, L, 1, D), out.shape
    assert jnp.allclose(out, ref, atol=1e-5, rtol=1e-5), "mismatch vs reference"
    print("KERNEL_OK")
</pallas_src>

<mosaic_0001>
module attributes {stable_mosaic.version = 11 : i64} {
  func.func @t_embed_kernel(%arg0: i32, %arg1: i32, %arg2: memref<1x8x16xf32, #tpu.memory_space<vmem>>, %arg3: memref<60x32xbf16, #tpu.memory_space<vmem>>, %arg4: memref<60x32xbf16, #tpu.memory_space<vmem>>, %arg5: memref<60x32xbf16, #tpu.memory_space<vmem>>, %arg6: memref<1x8x128xf32, #tpu.memory_space<vmem>>) attributes {dimension_semantics = [#tpu.dimension_semantics<parallel>, #tpu.dimension_semantics<parallel>], iteration_bounds = array<i64: 2, 1>, scalar_prefetch = 0 : i64, scratch_operands = 0 : i64, tpu.core_type = #tpu.core_type<tc>, window_params = [{transform_indices = @transform_0, window_bounds = array<i64: 1, 8, 16>}, {pipeline_mode = #tpu.pipeline_mode<synchronous>, transform_indices = @transform_1, window_bounds = array<i64: 60, 32>}, {pipeline_mode = #tpu.pipeline_mode<synchronous>, transform_indices = @transform_2, window_bounds = array<i64: 60, 32>}, {pipeline_mode = #tpu.pipeline_mode<synchronous>, transform_indices = @transform_3, window_bounds = array<i64: 60, 32>}, {transform_indices = @transform_4, window_bounds = array<i64: 1, 8, 128>}]} {
    %c0 = arith.constant 0 : index
    %c0_0 = arith.constant 0 : index
    %c0_1 = arith.constant 0 : index
    %0 = vector.load %arg2[%c0, %c0_0, %c0_1] : memref<1x8x16xf32, #tpu.memory_space<vmem>>, vector<1x8x16xf32>
    %1 = vector.shape_cast %0 : vector<1x8x16xf32> to vector<8x16xf32>
    %c0_2 = arith.constant 0 : index
    %c0_3 = arith.constant 0 : index
    %2 = vector.load %arg3[%c0_2, %c0_3] : memref<60x32xbf16, #tpu.memory_space<vmem>>, vector<60x32xbf16>
    %c0_4 = arith.constant 0 : index
    %c0_5 = arith.constant 0 : index
    %3 = vector.load %arg4[%c0_4, %c0_5] : memref<60x32xbf16, #tpu.memory_space<vmem>>, vector<60x32xbf16>
    %c0_6 = arith.constant 0 : index
    %c0_7 = arith.constant 0 : index
    %4 = vector.load %arg5[%c0_6, %c0_7] : memref<60x32xbf16, #tpu.memory_space<vmem>>, vector<60x32xbf16>
    %5 = tpu.iota {dimensions = array<i32: 1>} : vector<8x60xi32>
    %6 = vector.extract_strided_slice %1 {offsets = [0, 1], sizes = [8, 1], strides = [1, 1]} : vector<8x16xf32> to vector<8x1xf32>
    %7 = arith.fptosi %6 : vector<8x1xf32> to vector<8x1xi32>
    %8 = vector.broadcast %7 : vector<8x1xi32> to vector<8x60xi32>
    %9 = arith.cmpi eq, %8, %5 : vector<8x60xi32>
    %10 = arith.extui %9 : vector<8x60xi1> to vector<8x60xi32>
    %11 = arith.sitofp %10 : vector<8x60xi32> to vector<8x60xf32>
    %12 = arith.truncf %11 : vector<8x60xf32> to vector<8x60xbf16>
    %cst = arith.constant dense<0.000000e+00> : vector<8x32xf32>
    %13 = tpu.matmul %12, %2, %cst {dimension_numbers = #tpu.dot_dimension_numbers<[1], [0], [0], [1], [0, 0, 1, 1], [], []>} : vector<8x60xbf16>, vector<60x32xbf16>, vector<8x32xf32> -> vector<8x32xf32>
    %cst_8 = arith.constant dense<0.000000e+00> : vector<8x32xf32>
    %14 = tpu.matmul %12, %3, %cst_8 {dimension_numbers = #tpu.dot_dimension_numbers<[1], [0], [0], [1], [0, 0, 1, 1], [], []>} : vector<8x60xbf16>, vector<60x32xbf16>, vector<8x32xf32> -> vector<8x32xf32>
    %15 = arith.addf %13, %14 : vector<8x32xf32>
    %cst_9 = arith.constant dense<0.000000e+00> : vector<8x32xf32>
    %16 = tpu.matmul %12, %4, %cst_9 {dimension_numbers = #tpu.dot_dimension_numbers<[1], [0], [0], [1], [0, 0, 1, 1], [], []>} : vector<8x60xbf16>, vector<60x32xbf16>, vector<8x32xf32> -> vector<8x32xf32>
    %17 = arith.addf %15, %16 : vector<8x32xf32>
    %c0_10 = arith.constant 0 : index
    %c0_11 = arith.constant 0 : index
    %c0_12 = arith.constant 0 : index
    %18 = vector.load %arg6[%c0_10, %c0_11, %c0_12] : memref<1x8x128xf32, #tpu.memory_space<vmem>>, vector<1x8x32xf32>
    %19 = vector.shape_cast %18 : vector<1x8x32xf32> to vector<8x32xf32>
    %20 = vector.shape_cast %17 : vector<8x32xf32> to vector<1x8x32xf32>
    tpu.vector_store %arg6[%c0_10, %c0_11, %c0_12], %20 {strides = array<i32>} : memref<1x8x128xf32, #tpu.memory_space<vmem>>, vector<1x8x32xf32>,
    %21 = vector.extract_strided_slice %1 {offsets = [0, 5], sizes = [8, 1], strides = [1, 1]} : vector<8x16xf32> to vector<8x1xf32>
    %22 = arith.fptosi %21 : vector<8x1xf32> to vector<8x1xi32>
    %23 = vector.broadcast %22 : vector<8x1xi32> to vector<8x60xi32>
    %24 = arith.cmpi eq, %23, %5 : vector<8x60xi32>
    %25 = arith.extui %24 : vector<8x60xi1> to vector<8x60xi32>
    %26 = arith.sitofp %25 : vector<8x60xi32> to vector<8x60xf32>
    %27 = arith.truncf %26 : vector<8x60xf32> to vector<8x60xbf16>
    %cst_13 = arith.constant dense<0.000000e+00> : vector<8x32xf32>
    %28 = tpu.matmul %27, %2, %cst_13 {dimension_numbers = #tpu.dot_dimension_numbers<[1], [0], [0], [1], [0, 0, 1, 1], [], []>} : vector<8x60xbf16>, vector<60x32xbf16>, vector<8x32xf32> -> vector<8x32xf32>
    %cst_14 = arith.constant dense<0.000000e+00> : vector<8x32xf32>
    %29 = tpu.matmul %27, %3, %cst_14 {dimension_numbers = #tpu.dot_dimension_numbers<[1], [0], [0], [1], [0, 0, 1, 1], [], []>} : vector<8x60xbf16>, vector<60x32xbf16>, vector<8x32xf32> -> vector<8x32xf32>
    %30 = arith.addf %28, %29 : vector<8x32xf32>
    %cst_15 = arith.constant dense<0.000000e+00> : vector<8x32xf32>
    %31 = tpu.matmul %27, %4, %cst_15 {dimension_numbers = #tpu.dot_dimension_numbers<[1], [0], [0], [1], [0, 0, 1, 1], [], []>} : vector<8x60xbf16>, vector<60x32xbf16>, vector<8x32xf32> -> vector<8x32xf32>
    %32 = arith.addf %30, %31 : vector<8x32xf32>
    %c0_16 = arith.constant 0 : index
    %c0_17 = arith.constant 0 : index
    %c32 = arith.constant 32 : index
    %33 = vector.load %arg6[%c0_16, %c0_17, %c32] : memref<1x8x128xf32, #tpu.memory_space<vmem>>, vector<1x8x32xf32>
    %34 = vector.shape_cast %33 : vector<1x8x32xf32> to vector<8x32xf32>
    %35 = vector.shape_cast %32 : vector<8x32xf32> to vector<1x8x32xf32>
    tpu.vector_store %arg6[%c0_16, %c0_17, %c32], %35 {strides = array<i32>} : memref<1x8x128xf32, #tpu.memory_space<vmem>>, vector<1x8x32xf32>,
    %36 = vector.extract_strided_slice %1 {offsets = [0, 9], sizes = [8, 1], strides = [1, 1]} : vector<8x16xf32> to vector<8x1xf32>
    %37 = arith.fptosi %36 : vector<8x1xf32> to vector<8x1xi32>
    %38 = vector.broadcast %37 : vector<8x1xi32> to vector<8x60xi32>
    %39 = arith.cmpi eq, %38, %5 : vector<8x60xi32>
    %40 = arith.extui %39 : vector<8x60xi1> to vector<8x60xi32>
    %41 = arith.sitofp %40 : vector<8x60xi32> to vector<8x60xf32>
    %42 = arith.truncf %41 : vector<8x60xf32> to vector<8x60xbf16>
    %cst_18 = arith.constant dense<0.000000e+00> : vector<8x32xf32>
    %43 = tpu.matmul %42, %2, %cst_18 {dimension_numbers = #tpu.dot_dimension_numbers<[1], [0], [0], [1], [0, 0, 1, 1], [], []>} : vector<8x60xbf16>, vector<60x32xbf16>, vector<8x32xf32> -> vector<8x32xf32>
    %cst_19 = arith.constant dense<0.000000e+00> : vector<8x32xf32>
    %44 = tpu.matmul %42, %3, %cst_19 {dimension_numbers = #tpu.dot_dimension_numbers<[1], [0], [0], [1], [0, 0, 1, 1], [], []>} : vector<8x60xbf16>, vector<60x32xbf16>, vector<8x32xf32> -> vector<8x32xf32>
    %45 = arith.addf %43, %44 : vector<8x32xf32>
    %cst_20 = arith.constant dense<0.000000e+00> : vector<8x32xf32>
    %46 = tpu.matmul %42, %4, %cst_20 {dimension_numbers = #tpu.dot_dimension_numbers<[1], [0], [0], [1], [0, 0, 1, 1], [], []>} : vector<8x60xbf16>, vector<60x32xbf16>, vector<8x32xf32> -> vector<8x32xf32>
    %47 = arith.addf %45, %46 : vector<8x32xf32>
    %c0_21 = arith.constant 0 : index
    %c0_22 = arith.constant 0 : index
    %c64 = arith.constant 64 : index
    %48 = vector.load %arg6[%c0_21, %c0_22, %c64] : memref<1x8x128xf32, #tpu.memory_space<vmem>>, vector<1x8x32xf32>
    %49 = vector.shape_cast %48 : vector<1x8x32xf32> to vector<8x32xf32>
    %50 = vector.shape_cast %47 : vector<8x32xf32> to vector<1x8x32xf32>
    tpu.vector_store %arg6[%c0_21, %c0_22, %c64], %50 {strides = array<i32>} : memref<1x8x128xf32, #tpu.memory_space<vmem>>, vector<1x8x32xf32>,
    %51 = vector.extract_strided_slice %1 {offsets = [0, 13], sizes = [8, 1], strides = [1, 1]} : vector<8x16xf32> to vector<8x1xf32>
    %52 = arith.fptosi %51 : vector<8x1xf32> to vector<8x1xi32>
    %53 = vector.broadcast %52 : vector<8x1xi32> to vector<8x60xi32>
    %54 = arith.cmpi eq, %53, %5 : vector<8x60xi32>
    %55 = arith.extui %54 : vector<8x60xi1> to vector<8x60xi32>
    %56 = arith.sitofp %55 : vector<8x60xi32> to vector<8x60xf32>
    %57 = arith.truncf %56 : vector<8x60xf32> to vector<8x60xbf16>
    %cst_23 = arith.constant dense<0.000000e+00> : vector<8x32xf32>
    %58 = tpu.matmul %57, %2, %cst_23 {dimension_numbers = #tpu.dot_dimension_numbers<[1], [0], [0], [1], [0, 0, 1, 1], [], []>} : vector<8x60xbf16>, vector<60x32xbf16>, vector<8x32xf32> -> vector<8x32xf32>
    %cst_24 = arith.constant dense<0.000000e+00> : vector<8x32xf32>
    %59 = tpu.matmul %57, %3, %cst_24 {dimension_numbers = #tpu.dot_dimension_numbers<[1], [0], [0], [1], [0, 0, 1, 1], [], []>} : vector<8x60xbf16>, vector<60x32xbf16>, vector<8x32xf32> -> vector<8x32xf32>
    %60 = arith.addf %58, %59 : vector<8x32xf32>
    %cst_25 = arith.constant dense<0.000000e+00> : vector<8x32xf32>
    %61 = tpu.matmul %57, %4, %cst_25 {dimension_numbers = #tpu.dot_dimension_numbers<[1], [0], [0], [1], [0, 0, 1, 1], [], []>} : vector<8x60xbf16>, vector<60x32xbf16>, vector<8x32xf32> -> vector<8x32xf32>
    %62 = arith.addf %60, %61 : vector<8x32xf32>
    %c0_26 = arith.constant 0 : index
    %c0_27 = arith.constant 0 : index
    %c96 = arith.constant 96 : index
    %63 = vector.load %arg6[%c0_26, %c0_27, %c96] : memref<1x8x128xf32, #tpu.memory_space<vmem>>, vector<1x8x32xf32>
    %64 = vector.shape_cast %63 : vector<1x8x32xf32> to vector<8x32xf32>
    %65 = vector.shape_cast %62 : vector<8x32xf32> to vector<1x8x32xf32>
    tpu.vector_store %arg6[%c0_26, %c0_27, %c96], %65 {strides = array<i32>} : memref<1x8x128xf32, #tpu.memory_space<vmem>>, vector<1x8x32xf32>,
    return
  }
  func.func @transform_0(%arg0: i32, %arg1: i32) -> (i32, i32, i32) {
    %c0_i32 = arith.constant 0 : i32
    %c0_i32_0 = arith.constant 0 : i32
    return %arg0, %arg1, %c0_i32 : i32, i32, i32
  }
  func.func @transform_1(%arg0: i32, %arg1: i32) -> (i32, i32) {
    %c0_i32 = arith.constant 0 : i32
    %c0_i32_0 = arith.constant 0 : i32
    %c0_i32_1 = arith.constant 0 : i32
    return %c0_i32, %c0_i32_0 : i32, i32
  }
  func.func @transform_2(%arg0: i32, %arg1: i32) -> (i32, i32) {
    %c0_i32 = arith.constant 0 : i32
    %c0_i32_0 = arith.constant 0 : i32
    %c0_i32_1 = arith.constant 0 : i32
    return %c0_i32, %c0_i32_0 : i32, i32
  }
  func.func @transform_3(%arg0: i32, %arg1: i32) -> (i32, i32) {
    %c0_i32 = arith.constant 0 : i32
    %c0_i32_0 = arith.constant 0 : i32
    %c0_i32_1 = arith.constant 0 : i32
    return %c0_i32, %c0_i32_0 : i32, i32
  }
  func.func @transform_4(%arg0: i32, %arg1: i32) -> (i32, i32, i32) {
    %c0_i32 = arith.constant 0 : i32
    %c0_i32_0 = arith.constant 0 : i32
    return %arg0, %arg1, %c0_i32 : i32, i32, i32
  }
}

</mosaic_0001>

<llo_original>
// kernel: tpu_custom_call.1
$region0: #{tpu_custom_call.1}
  #allocation0 [shape = 'u32[]', space=smem, size = 0x4, offset = 0x4, fixed_abs, tag = 'smem constant byte address 0x4 - core index']
  #allocation1 [shape = 'u32[144,128]{1,0:T(1,128)}', space=vmem, size = 0x12000, scoped, tag = 'internal scratch']
  %s0 = inlined_call_operand.vmem [shape: f32[2,8,16], index: 0, kind: input, shape index: {}]
  %s1 = inlined_call_operand.vmem [shape: bf16[60,32], index: 1, kind: input, shape index: {}]
  %s2 = inlined_call_operand.vmem [shape: bf16[60,32], index: 2, kind: input, shape index: {}]
  %s3 = inlined_call_operand.vmem [shape: bf16[60,32], index: 3, kind: input, shape index: {}]
  %s4 = inlined_call_operand.hbm [shape: f32[2,8,128], index: 4, kind: output, shape index: {}]
  %s5 = sld [smem:[#allocation0]]
  $region49: #{tpu_custom_call.1} parent=0
    _
  %s7 = ssub.s32 1, %s5
  %s8 = scalar_select 0, %s7, %s5
  $region1: #{tpu_custom_call.1} parent=0
    #allocation2 [shape = 'u8[8192]{0}', space=vmem, size = 0x2000, scoped, tag = 'output window, operand 0']
    #allocation3 [shape = 's32[2]{0}', space=sflag, size = 0x8, scoped, tag = 'scoped memory for tpu_custom_call.1']
    %9 = vsyncpa [#allocation3], 0
    %s10 = scalar_lea.sflag [#allocation3], 1
    %11 = vsyncpa %s10, 0
    loop: start=0, step=1, limit=4
    $region2: #{tpu_custom_call.1} parent=1 // loop_pre_header
      _
    $region3: #{tpu_custom_call.1} parent=1 // loop_header
      %s13 = sphi 0, %s17
      %p14 = scmp.ge.s32.totalorder %s13, 4
      %s20 = sphi 0, %s32
      %s21 = sphi 0, %s28
      %s22 = sphi 0, %s20
      %s23 = sphi 0, %s21
      %s24 = sphi 0, %s22
      %s25 = sphi 0, %s23
      %s37 = sphi 0, %s39
      %s40 = sphi 0, %s37
      %s41 = sphi 0, %s40
      %s57 = sphi 0, %s41
      %s61 = sphi 0, %s61
      %s63 = sphi 0, %s61
      %s64 = sphi 0, %s63
      %s78 = sphi 0, %s64
      %s82 = sphi 0, %s82
      %s84 = sphi 0, %s82
      %s85 = sphi 0, %s84
      %s99 = sphi 0, %s85
      %s103 = sphi 0, %s103
      %s105 = sphi 0, %s103
      %s106 = sphi 0, %s105
      %s120 = sphi 0, %s106
      %s128 = sphi 0, %s130
      %s131 = sphi 0, %s128
      %s132 = sphi 0, %s131
      %s148 = sphi 0, %s132
    $region4: #{tpu_custom_call.1} parent=1 // loop_header_branch
      %16 = sbr.rel (%p14) target = $region8
    $region5: #{tpu_custom_call.1} parent=1 // loop_body
      %s18 = ssub.s32 %s13, 1
      %s19 = ssub.s32 %s13, 2
      %s26 = sadd.s32 1, %s21
      %p27 = scmp.ge.s32.totalorder %s26, 1
      %s28 = scalar_select %p27, 0, %s26
      %s29 = sadd.s32 1, %s20
      %s30 = scalar_select %p27, %s29, %s20
      %p31 = scmp.ge.s32.totalorder %s30, 2
      %s32 = scalar_select %p31, 0, %s30
      %s33 = ssub.s32 %s20, %s32
      %s34 = ssub.s32 %s21, %s28
      %s35 = sor.u32 %s33, %s34
      %p36 = scmp.eq.s32.totalorder %s35, 0
      %s38 = sadd.s32 %s37, 1
      %s39 = scalar_select %p36, %s37, %s38
      %p42 = pneg %p36
      %p43 = scmp.eq.s32.totalorder %s13, 1
      %p44 = por %p42, %p43
      %p45 = scmp.ne.s32.totalorder %s37, %s40
      %p46 = scmp.eq.s32.totalorder %s13, 0
      %p47 = por %p45, %p46
      %p48 = scmp.ne.s32.totalorder %s37, %s40
      %p49 = scmp.eq.s32.totalorder %s18, 1
      %p50 = por %p48, %p49
      %p51 = scmp.ne.s32.totalorder %s40, %s41
      %p52 = scmp.eq.s32.totalorder %s18, 0
      %p53 = por %p51, %p52
      %p54 = scmp.ne.s32.totalorder %s40, %s41
      %p55 = scmp.eq.s32.totalorder %s19, 1
      %p56 = por %p54, %p55
      %p58 = scmp.ne.s32.totalorder %s41, %s57
      %p59 = scmp.eq.s32.totalorder %s19, 0
      %p60 = por %p58, %p59
      %s62 = sadd.s32 %s61, 1
      %p65 = scmp.eq.s32.totalorder %s13, 1
      %p66 = scmp.ne.s32.totalorder %s61, %s63
      %p67 = scmp.eq.s32.totalorder %s13, 0
      %p68 = por %p66, %p67
      %p69 = scmp.ne.s32.totalorder %s61, %s63
      %p70 = scmp.eq.s32.totalorder %s18, 1
      %p71 = por %p69, %p70
      %p72 = scmp.ne.s32.totalorder %s63, %s64
      %p73 = scmp.eq.s32.totalorder %s18, 0
      %p74 = por %p72, %p73
      %p75 = scmp.ne.s32.totalorder %s63, %s64
      %p76 = scmp.eq.s32.totalorder %s19, 1
      %p77 = por %p75, %p76
      %p79 = scmp.ne.s32.totalorder %s64, %s78
      %p80 = scmp.eq.s32.totalorder %s19, 0
      %p81 = por %p79, %p80
      %s83 = sadd.s32 %s82, 1
      %p86 = scmp.eq.s32.totalorder %s13, 1
      %p87 = scmp.ne.s32.totalorder %s82, %s84
      %p88 = scmp.eq.s32.totalorder %s13, 0
      %p89 = por %p87, %p88
      %p90 = scmp.ne.s32.totalorder %s82, %s84
      %p91 = scmp.eq.s32.totalorder %s18, 1
      %p92 = por %p90, %p91
      %p93 = scmp.ne.s32.totalorder %s84, %s85
      %p94 = scmp.eq.s32.totalorder %s18, 0
      %p95 = por %p93, %p94
      %p96 = scmp.ne.s32.totalorder %s84, %s85
      %p97 = scmp.eq.s32.totalorder %s19, 1
      %p98 = por %p96, %p97
      %p100 = scmp.ne.s32.totalorder %s85, %s99
      %p101 = scmp.eq.s32.totalorder %s19, 0
      %p102 = por %p100, %p101
      %s104 = sadd.s32 %s103, 1
      %p107 = scmp.eq.s32.totalorder %s13, 1
      %p108 = scmp.ne.s32.totalorder %s103, %s105
      %p109 = scmp.eq.s32.totalorder %s13, 0
      %p110 = por %p108, %p109
      %p111 = scmp.ne.s32.totalorder %s103, %s105
      %p112 = scmp.eq.s32.totalorder %s18, 1
      %p113 = por %p111, %p112
      %p114 = scmp.ne.s32.totalorder %s105, %s106
      %p115 = scmp.eq.s32.totalorder %s18, 0
      %p116 = por %p114, %p115
      %p117 = scmp.ne.s32.totalorder %s105, %s106
      %p118 = scmp.eq.s32.totalorder %s19, 1
      %p119 = por %p117, %p118
      %p121 = scmp.ne.s32.totalorder %s106, %s120
      %p122 = scmp.eq.s32.totalorder %s19, 0
      %p123 = por %p121, %p122
      %s124 = ssub.s32 %s20, %s32
      %s125 = ssub.s32 %s21, %s28
      %s126 = sor.u32 %s124, %s125
      %p127 = scmp.eq.s32.totalorder %s126, 0
      %s129 = sadd.s32 %s128, 1
      %s130 = scalar_select %p127, %s128, %s129
      %p133 = pneg %p127
      %p134 = scmp.eq.s32.totalorder %s13, 1
      %p135 = por %p133, %p134
      %p136 = scmp.ne.s32.totalorder %s128, %s131
      %p137 = scmp.eq.s32.totalorder %s13, 0
      %p138 = por %p136, %p137
      %p139 = scmp.ne.s32.totalorder %s128, %s131
      %p140 = scmp.eq.s32.totalorder %s18, 1
      %p141 = por %p139, %p140
      %p142 = scmp.ne.s32.totalorder %s131, %s132
      %p143 = scmp.eq.s32.totalorder %s18, 0
      %p144 = por %p142, %p143
      %p145 = scmp.ne.s32.totalorder %s131, %s132
      %p146 = scmp.eq.s32.totalorder %s19, 1
      %p147 = por %p145, %p146
      %p149 = scmp.ne.s32.totalorder %s132, %s148
      %p150 = scmp.eq.s32.totalorder %s19, 0
      %p151 = por %p149, %p150
      %p152 = scmp.le.s32.totalorder 1, %s13
      %p153 = scmp.lt.s32.totalorder %s13, 3
      %p154 = pnand %p152, %p153
      %p155 = pneg %p154
      // Predicated region
      $region9: #{tpu_custom_call.1} parent=5 // pred_check
        _
      $region10: #{tpu_custom_call.1} parent=5 // pred_check_branch
        %157 = sbr.rel (%p154) target = $region12
      $region11: #{tpu_custom_call.1} parent=5 // pred_region
        %s158 = ssub.s32 %s13, 1
        // Predicated region
        $region13: #{tpu_custom_call.1} parent=11 // pred_check
          %p159 = pneg %p74
        $region14: #{tpu_custom_call.1} parent=11 // pred_check_branch
          %161 = sbr.rel (%p159) target = $region16
        $region15: #{tpu_custom_call.1} parent=11 // pred_region
          _
        $region16: #{tpu_custom_call.1} parent=11 // pred_fallthru
          _
        // Predicated region
        $region17: #{tpu_custom_call.1} parent=11 // pred_check
          %p162 = pneg %p95
        $region18: #{tpu_custom_call.1} parent=11 // pred_check_branch
          %164 = sbr.rel (%p162) target = $region20
        $region19: #{tpu_custom_call.1} parent=11 // pred_region
          _
        $region20: #{tpu_custom_call.1} parent=11 // pred_fallthru
          _
        // Predicated region
        $region21: #{tpu_custom_call.1} parent=11 // pred_check
          %p165 = pneg %p116
        $region22: #{tpu_custom_call.1} parent=11 // pred_check_branch
          %167 = sbr.rel (%p165) target = $region24
        $region23: #{tpu_custom_call.1} parent=11 // pred_region
          _
        $region24: #{tpu_custom_call.1} parent=11 // pred_fallthru
          _
      $region12: #{tpu_custom_call.1} parent=5 // pred_fallthru
        _
      %p168 = scmp.lt.s32.totalorder %s13, 2
      // Predicated region
      $region25: #{tpu_custom_call.1} parent=5 // pred_check
        %p169 = pneg %p168
      $region26: #{tpu_custom_call.1} parent=5 // pred_check_branch
        %171 = sbr.rel (%p169) target = $region28
      $region27: #{tpu_custom_call.1} parent=5 // pred_region
        // Predicated region
        $region29: #{tpu_custom_call.1} parent=27 // pred_check
          %p172 = pneg %p47
        $region30: #{tpu_custom_call.1} parent=27 // pred_check_branch
          %174 = sbr.rel (%p172) target = $region32
        $region31: #{tpu_custom_call.1} parent=27 // pred_region
          %p175 = scmp.lt.s32.totalorder %s20, 1
          %s176 = scalar_select %p175, %s20, 1
          %p177 = scmp.lt.s32.totalorder %s21, 0
          %s178 = scalar_select %p177, %s21, 0
          %s179 = sadd.s32 %s178, %s176
          %s180 = smul.addr %s179, 8
          %s181 = scalar_lea.vmem %s0, %s180
        $region32: #{tpu_custom_call.1} parent=27 // pred_fallthru
          _
      $region28: #{tpu_custom_call.1} parent=5 // pred_fallthru
        _
      %p182 = scmp.le.s32.totalorder 1, %s13
      %p183 = scmp.lt.s32.totalorder %s13, 3
      %p184 = pnand %p182, %p183
      %p185 = pneg %p184
      // Predicated region
      $region33: #{tpu_custom_call.1} parent=5 // pred_check
        _
      $region34: #{tpu_custom_call.1} parent=5 // pred_check_branch
        %187 = sbr.rel (%p184) target = $region36
      $region35: #{tpu_custom_call.1} parent=5 // pred_region
        %s188 = ssub.s32 %s13, 1
        %p189 = scmp.lt.s32.totalorder %s22, 1
        %s190 = scalar_select %p189, %s22, 1
        %p191 = scmp.lt.s32.totalorder %s23, 0
        %s192 = scalar_select %p191, %s23, 0
        %s193 = sadd.s32 %s192, %s190
        %s194 = smul.addr %s193, 8
        %s195 = scalar_lea.vmem %s0, %s194
        %p196 = pneg %p53
        %p197 = pneg %p50
        %p198 = pneg %p74
        %p199 = pneg %p71
        %p200 = pneg %p95
        %p201 = pneg %p92
        %p202 = pneg %p116
        %p203 = pneg %p113
        %p204 = pneg %p144
        %p205 = pneg %p141
        %s206 = sand.u32 %s131, 1
        %s207 = scalar_lea.sflag [#allocation3], %s206
        %s208 = sand.u32 %s131, 1
        %s209 = smul.addr %s208, 8
        %s210 = scalar_lea.vmem [#allocation2], %s209
        %p211 = scmp.lt.s32.totalorder %s22, 1
        %s212 = scalar_select %p211, %s22, 1
        %p213 = scmp.lt.s32.totalorder %s23, 0
        %s214 = scalar_select %p213, %s23, 0
        %s215 = sadd.s32 %s214, %s212
        %s216 = smul.addr %s215, 8
        %s217 = scalar_lea.vmem %s0, %s216
        %v219 = vld [vmem:[%s217] sm:$0xff]
        %v220 = vld [vmem:[%s1] sm:$0xf]
        %v221 = vld [vmem:[%s1 + $0x4] sm:$0xf]
        %v222 = vld [vmem:[%s1 + $0x8] sm:$0xf]
        %v223 = vld [vmem:[%s1 + $0xc] sm:$0xf]
        %v224 = vld [vmem:[%s1 + $0x10] sm:$0xf]
        %v225 = vld [vmem:[%s1 + $0x14] sm:$0xf]
        %v226 = vld [vmem:[%s1 + $0x18] sm:$0xf]
        %v227 = vld [vmem:[%s1 + $0x1c] sm:$0x3]
        %v228 = vld [vmem:[%s2] sm:$0xf]
        %v229 = vld [vmem:[%s2 + $0x4] sm:$0xf]
        %v230 = vld [vmem:[%s2 + $0x8] sm:$0xf]
        %v231 = vld [vmem:[%s2 + $0xc] sm:$0xf]
        %v232 = vld [vmem:[%s2 + $0x10] sm:$0xf]
        %v233 = vld [vmem:[%s2 + $0x14] sm:$0xf]
        %v234 = vld [vmem:[%s2 + $0x18] sm:$0xf]
        %v235 = vld [vmem:[%s2 + $0x1c] sm:$0x3]
        %v236 = vld [vmem:[%s3] sm:$0xf]
        %v237 = vld [vmem:[%s3 + $0x4] sm:$0xf]
        %v238 = vld [vmem:[%s3 + $0x8] sm:$0xf]
        %v239 = vld [vmem:[%s3 + $0xc] sm:$0xf]
        %v240 = vld [vmem:[%s3 + $0x10] sm:$0xf]
        %v241 = vld [vmem:[%s3 + $0x14] sm:$0xf]
        %v242 = vld [vmem:[%s3 + $0x18] sm:$0xf]
        %v243 = vld [vmem:[%s3 + $0x1c] sm:$0x3]
        %v244 = vlaneseq
        %v245 = vand.u32 %v244, 127
        %v246 = vcvt.f32.s32.to.zero.pseudo %v219
        %247 = vset.pattern.permute.xlu0 1
        %248 = vperm.xlu0 %247, %v246
        %v249 = vpop.permute.xlu0 %248
        %vm250 = vcmp.eq.s32.totalorder %v249, %v245
        %v251 = vsel %vm250, 1, 0
        %v252 = vcvt.s32.f32 %v251
        %v253 = vpack.c.bf16 %v252, %v252
        %v262 = vunpack.c.l.b16 %v228
        %v263 = vunpack.c.l.b16 %v229
        %v264 = vunpack.c.l.b16 %v230
        %v265 = vunpack.c.l.b16 %v231
        %v266 = vunpack.c.l.b16 %v232
        %v267 = vunpack.c.l.b16 %v233
        %v268 = vunpack.c.l.b16 %v234
        %v269 = vunpack.c.l.b16 %v235
        %v270 = vpack.c.b16 %v263, %v262
        %v271 = vpack.c.b16 %v265, %v264
        %v272 = vpack.c.b16 %v267, %v266
        %v273 = vpack.c.b16 %v269, %v268
        %vm277 = vcmask 490496
        %v279 = vsel %vm277, %v253, 0
        %vm281 = vcmask 1045504
        %v283 = vsel %vm281, %v273, 0
        %285 = vmatprep.subr.bf16.mxu0 0
        %286 = vmatpush1.bf16.msra.mxu0 %v270
        %287 = vmatprep.subr.bf16.mxu0 0
        %288 = vmatpush1.bf16.msra.mxu0 %v271
        %289 = vmatprep.subr.bf16.mxu0 0
        %290 = vmatpush1.bf16.msra.mxu0 %v272
        %291 = vmatprep.subr.bf16.mxu0 0
        %292 = vmatpush1.bf16.msra.mxu0 %v283
        %293 = vmatprep.subr.bf16.mxu0 0
        %294 = vmatpush1.bf16.msra.mxu0 0
        %295 = vmatprep.subr.bf16.mxu0 0
        %296 = vmatpush1.bf16.msra.mxu0 0
        %297 = vmatprep.subr.bf16.mxu0 0
        %298 = vmatpush1.bf16.msra.mxu0 0
        %299 = vmatprep.subr.bf16.mxu0 0
        %300 = vmatpush1.bf16.msra.mxu0 0
        %301 = vmatprep.subr.bf16.mxu0 0
        %302 = vmatpush1.bf16.msra.mxu0 0
        %303 = vmatprep.subr.bf16.mxu0 0
        %304 = vmatpush1.bf16.msra.mxu0 0
        %305 = vmatprep.subr.bf16.mxu0 0
        %306 = vmatpush1.bf16.msra.mxu0 0
        %307 = vmatprep.subr.bf16.mxu0 0
        %308 = vmatpush1.bf16.msra.mxu0 0
        %309 = vmatprep.subr.bf16.mxu0 0
        %310 = vmatpush1.bf16.msra.mxu0 0
        %311 = vmatprep.subr.bf16.mxu0 0
        %312 = vmatpush1.bf16.msra.mxu0 0
        %313 = vmatprep.subr.bf16.mxu0 0
        %314 = vmatpush1.bf16.msra.mxu0 0
        %315 = vmatprep.subr.bf16.mxu0 0
        %316 = vmatpush1.bf16.msra.mxu0 0
        %317 = vmatprep.mubr.bf16.mxu0 0
        %318 = vmatmul.mubr.bf16.gmra.mrb[0].mxu0 %v279
        %v319 = vpop.f32.mrb[0].mxu0
        %v320 = vadd.f32 0.0, %v319
        %v321 = vpop.f32.mrb[0].mxu0
        %v322 = vpop.f32.mrb[0].mxu0
        %v323 = vpop.f32.mrb[0].mxu0
        %324 = vdwg.mxu0
        %v333 = vunpack.c.l.b16 %v220
        %v334 = vunpack.c.l.b16 %v221
        %v335 = vunpack.c.l.b16 %v222
        %v336 = vunpack.c.l.b16 %v223
        %v337 = vunpack.c.l.b16 %v224
        %v338 = vunpack.c.l.b16 %v225
        %v339 = vunpack.c.l.b16 %v226
        %v340 = vunpack.c.l.b16 %v227
        %v341 = vpack.c.b16 %v334, %v333
        %v342 = vpack.c.b16 %v336, %v335
        %v343 = vpack.c.b16 %v338, %v337
        %v344 = vpack.c.b16 %v340, %v339
        %v349 = vsel %vm281, %v344, 0
        %351 = vmatprep.subr.bf16.mxu0 0
        %352 = vmatpush1.bf16.msra.mxu0 %v341
        %353 = vmatprep.subr.bf16.mxu0 0
        %354 = vmatpush1.bf16.msra.mxu0 %v342
        %355 = vmatprep.subr.bf16.mxu0 0
        %356 = vmatpush1.bf16.msra.mxu0 %v343
        %357 = vmatprep.subr.bf16.mxu0 0
        %358 = vmatpush1.bf16.msra.mxu0 %v349
        %359 = vmatprep.subr.bf16.mxu0 0
        %360 = vmatpush1.bf16.msra.mxu0 0
        %361 = vmatprep.subr.bf16.mxu0 0
        %362 = vmatpush1.bf16.msra.mxu0 0
        %363 = vmatprep.subr.bf16.mxu0 0
        %364 = vmatpush1.bf16.msra.mxu0 0
        %365 = vmatprep.subr.bf16.mxu0 0
        %366 = vmatpush1.bf16.msra.mxu0 0
        %367 = vmatprep.subr.bf16.mxu0 0
        %368 = vmatpush1.bf16.msra.mxu0 0
        %369 = vmatprep.subr.bf16.mxu0 0
        %370 = vmatpush1.bf16.msra.mxu0 0
        %371 = vmatprep.subr.bf16.mxu0 0
        %372 = vmatpush1.bf16.msra.mxu0 0
        %373 = vmatprep.subr.bf16.mxu0 0
        %374 = vmatpush1.bf16.msra.mxu0 0
        %375 = vmatprep.subr.bf16.mxu0 0
        %376 = vmatpush1.bf16.msra.mxu0 0
        %377 = vmatprep.subr.bf16.mxu0 0
        %378 = vmatpush1.bf16.msra.mxu0 0
        %379 = vmatprep.subr.bf16.mxu0 0
        %380 = vmatpush1.bf16.msra.mxu0 0
        %381 = vmatprep.subr.bf16.mxu0 0
        %382 = vmatpush1.bf16.msra.mxu0 0
        %383 = vmatprep.mubr.bf16.mxu0 0
        %384 = vmatmul.mubr.bf16.gmra.mrb[0].mxu0 %v279
        %v385 = vpop.f32.mrb[0].mxu0
        %v386 = vadd.f32 %v320, %v385
        %v387 = vpop.f32.mrb[0].mxu0
        %v388 = vpop.f32.mrb[0].mxu0
        %v389 = vpop.f32.mrb[0].mxu0
        %390 = vdwg.mxu0
        %v399 = vunpack.c.l.b16 %v236
        %v400 = vunpack.c.l.b16 %v237
        %v401 = vunpack.c.l.b16 %v238
        %v402 = vunpack.c.l.b16 %v239
        %v403 = vunpack.c.l.b16 %v240
        %v404 = vunpack.c.l.b16 %v241
        %v405 = vunpack.c.l.b16 %v242
        %v406 = vunpack.c.l.b16 %v243
        %v407 = vpack.c.b16 %v400, %v399
        %v408 = vpack.c.b16 %v402, %v401
        %v409 = vpack.c.b16 %v404, %v403
        %v410 = vpack.c.b16 %v406, %v405
        %v415 = vsel %vm281, %v410, 0
        %417 = vmatprep.subr.bf16.mxu0 0
        %418 = vmatpush1.bf16.msra.mxu0 %v407
        %419 = vmatprep.subr.bf16.mxu0 0
        %420 = vmatpush1.bf16.msra.mxu0 %v408
        %421 = vmatprep.subr.bf16.mxu0 0
        %422 = vmatpush1.bf16.msra.mxu0 %v409
        %423 = vmatprep.subr.bf16.mxu0 0
        %424 = vmatpush1.bf16.msra.mxu0 %v415
        %425 = vmatprep.subr.bf16.mxu0 0
        %426 = vmatpush1.bf16.msra.mxu0 0
        %427 = vmatprep.subr.bf16.mxu0 0
        %428 = vmatpush1.bf16.msra.mxu0 0
        %429 = vmatprep.subr.bf16.mxu0 0
        %430 = vmatpush1.bf16.msra.mxu0 0
        %431 = vmatprep.subr.bf16.mxu0 0
        %432 = vmatpush1.bf16.msra.mxu0 0
        %433 = vmatprep.subr.bf16.mxu0 0
        %434 = vmatpush1.bf16.msra.mxu0 0
        %435 = vmatprep.subr.bf16.mxu0 0
        %436 = vmatpush1.bf16.msra.mxu0 0
        %437 = vmatprep.subr.bf16.mxu0 0
        %438 = vmatpush1.bf16.msra.mxu0 0
        %439 = vmatprep.subr.bf16.mxu0 0
        %440 = vmatpush1.bf16.msra.mxu0 0
        %441 = vmatprep.subr.bf16.mxu0 0
        %442 = vmatpush1.bf16.msra.mxu0 0
        %443 = vmatprep.subr.bf16.mxu0 0
        %444 = vmatpush1.bf16.msra.mxu0 0
        %445 = vmatprep.subr.bf16.mxu0 0
        %446 = vmatpush1.bf16.msra.mxu0 0
        %447 = vmatprep.subr.bf16.mxu0 0
        %448 = vmatpush1.bf16.msra.mxu0 0
        %449 = vmatprep.mubr.bf16.mxu0 0
        %450 = vmatmul.mubr.bf16.gmra.mrb[0].mxu0 %v279
        %v451 = vpop.f32.mrb[0].mxu0
        %v452 = vadd.f32 0.0, %v451
        %v453 = vpop.f32.mrb[0].mxu0
        %v454 = vpop.f32.mrb[0].mxu0
        %v455 = vpop.f32.mrb[0].mxu0
        %456 = vdwg.mxu0
        %v457 = vadd.f32 %v386, %v452
        %vm458 = vcmask 261120
        %459 = vst.msk [vmem:[%s210] sm:$0xff] %vm458, %v457
        %460 = vset.pattern.permute.xlu0 5
        %461 = vperm.xlu0 %460, %v246
        %v462 = vpop.permute.xlu0 %461
        %vm463 = vcmp.eq.s32.totalorder %v462, %v245
        %v464 = vsel %vm463, 1, 0
        %v465 = vcvt.s32.f32 %v464
        %v466 = vpack.c.bf16 %v465, %v465
        %v468 = vsel %vm277, %v466, 0
        %470 = vmatprep.subr.bf16.mxu0 0
        %471 = vmatpush1.bf16.msra.mxu0 %v270
        %472 = vmatprep.subr.bf16.mxu0 0
        %473 = vmatpush1.bf16.msra.mxu0 %v271
        %474 = vmatprep.subr.bf16.mxu0 0
        %475 = vmatpush1.bf16.msra.mxu0 %v272
        %476 = vmatprep.subr.bf16.mxu0 0
        %477 = vmatpush1.bf16.msra.mxu0 %v283
        %478 = vmatprep.subr.bf16.mxu0 0
        %479 = vmatpush1.bf16.msra.mxu0 0
        %480 = vmatprep.subr.bf16.mxu0 0
        %481 = vmatpush1.bf16.msra.mxu0 0
        %482 = vmatprep.subr.bf16.mxu0 0
        %483 = vmatpush1.bf16.msra.mxu0 0
        %484 = vmatprep.subr.bf16.mxu0 0
        %485 = vmatpush1.bf16.msra.mxu0 0
        %486 = vmatprep.subr.bf16.mxu0 0
        %487 = vmatpush1.bf16.msra.mxu0 0
        %488 = vmatprep.subr.bf16.mxu0 0
        %489 = vmatpush1.bf16.msra.mxu0 0
        %490 = vmatprep.subr.bf16.mxu0 0
        %491 = vmatpush1.bf16.msra.mxu0 0
        %492 = vmatprep.subr.bf16.mxu0 0
        %493 = vmatpush1.bf16.msra.mxu0 0
        %494 = vmatprep.subr.bf16.mxu0 0
        %495 = vmatpush1.bf16.msra.mxu0 0
        %496 = vmatprep.subr.bf16.mxu0 0
        %497 = vmatpush1.bf16.msra.mxu0 0
        %498 = vmatprep.subr.bf16.mxu0 0
        %499 = vmatpush1.bf16.msra.mxu0 0
        %500 = vmatprep.subr.bf16.mxu0 0
        %501 = vmatpush1.bf16.msra.mxu0 0
        %502 = vmatprep.mubr.bf16.mxu0 0
        %503 = vmatmul.mubr.bf16.gmra.mrb[0].mxu0 %v468
        %v504 = vpop.f32.mrb[0].mxu0
        %v505 = vadd.f32 0.0, %v504
        %v506 = vpop.f32.mrb[0].mxu0
        %v507 = vpop.f32.mrb[0].mxu0
        %v508 = vpop.f32.mrb[0].mxu0
        %509 = vdwg.mxu0
        %510 = vmatprep.subr.bf16.mxu0 0
        %511 = vmatpush1.bf16.msra.mxu0 %v341
        %512 = vmatprep.subr.bf16.mxu0 0
        %513 = vmatpush1.bf16.msra.mxu0 %v342
        %514 = vmatprep.subr.bf16.mxu0 0
        %515 = vmatpush1.bf16.msra.mxu0 %v343
        %516 = vmatprep.subr.bf16.mxu0 0
        %517 = vmatpush1.bf16.msra.mxu0 %v349
        %518 = vmatprep.subr.bf16.mxu0 0
        %519 = vmatpush1.bf16.msra.mxu0 0
        %520 = vmatprep.subr.bf16.mxu0 0
        %521 = vmatpush1.bf16.msra.mxu0 0
        %522 = vmatprep.subr.bf16.mxu0 0
        %523 = vmatpush1.bf16.msra.mxu0 0
        %524 = vmatprep.subr.bf16.mxu0 0
        %525 = vmatpush1.bf16.msra.mxu0 0
        %526 = vmatprep.subr.bf16.mxu0 0
        %527 = vmatpush1.bf16.msra.mxu0 0
        %528 = vmatprep.subr.bf16.mxu0 0
        %529 = vmatpush1.bf16.msra.mxu0 0
        %530 = vmatprep.subr.bf16.mxu0 0
        %531 = vmatpush1.bf16.msra.mxu0 0
        %532 = vmatprep.subr.bf16.mxu0 0
        %533 = vmatpush1.bf16.msra.mxu0 0
        %534 = vmatprep.subr.bf16.mxu0 0
        %535 = vmatpush1.bf16.msra.mxu0 0
        %536 = vmatprep.subr.bf16.mxu0 0
        %537 = vmatpush1.bf16.msra.mxu0 0
        %538 = vmatprep.subr.bf16.mxu0 0
        %539 = vmatpush1.bf16.msra.mxu0 0
        %540 = vmatprep.subr.bf16.mxu0 0
        %541 = vmatpush1.bf16.msra.mxu0 0
        %542 = vmatprep.mubr.bf16.mxu0 0
        %543 = vmatmul.mubr.bf16.gmra.mrb[0].mxu0 %v468
        %v544 = vpop.f32.mrb[0].mxu0
        %v545 = vadd.f32 %v505, %v544
        %v546 = vpop.f32.mrb[0].mxu0
        %v547 = vpop.f32.mrb[0].mxu0
        %v548 = vpop.f32.mrb[0].mxu0
        %549 = vdwg.mxu0
        %550 = vmatprep.subr.bf16.mxu0 0
        %551 = vmatpush1.bf16.msra.mxu0 %v407
        %552 = vmatprep.subr.bf16.mxu0 0
        %553 = vmatpush1.bf16.msra.mxu0 %v408
        %554 = vmatprep.subr.bf16.mxu0 0
        %555 = vmatpush1.bf16.msra.mxu0 %v409
        %556 = vmatprep.subr.bf16.mxu0 0
        %557 = vmatpush1.bf16.msra.mxu0 %v415
        %558 = vmatprep.subr.bf16.mxu0 0
        %559 = vmatpush1.bf16.msra.mxu0 0
        %560 = vmatprep.subr.bf16.mxu0 0
        %561 = vmatpush1.bf16.msra.mxu0 0
        %562 = vmatprep.subr.bf16.mxu0 0
        %563 = vmatpush1.bf16.msra.mxu0 0
        %564 = vmatprep.subr.bf16.mxu0 0
        %565 = vmatpush1.bf16.msra.mxu0 0
        %566 = vmatprep.subr.bf16.mxu0 0
        %567 = vmatpush1.bf16.msra.mxu0 0
        %568 = vmatprep.subr.bf16.mxu0 0
        %569 = vmatpush1.bf16.msra.mxu0 0
        %570 = vmatprep.subr.bf16.mxu0 0
        %571 = vmatpush1.bf16.msra.mxu0 0
        %572 = vmatprep.subr.bf16.mxu0 0
        %573 = vmatpush1.bf16.msra.mxu0 0
        %574 = vmatprep.subr.bf16.mxu0 0
        %575 = vmatpush1.bf16.msra.mxu0 0
        %576 = vmatprep.subr.bf16.mxu0 0
        %577 = vmatpush1.bf16.msra.mxu0 0
        %578 = vmatprep.subr.bf16.mxu0 0
        %579 = vmatpush1.bf16.msra.mxu0 0
        %580 = vmatprep.subr.bf16.mxu0 0
        %581 = vmatpush1.bf16.msra.mxu0 0
        %582 = vmatprep.mubr.bf16.mxu0 0
        %583 = vmatmul.mubr.bf16.gmra.mrb[0].mxu0 %v468
        %v584 = vpop.f32.mrb[0].mxu0
        %v585 = vadd.f32 0.0, %v584
        %v586 = vpop.f32.mrb[0].mxu0
        %v587 = vpop.f32.mrb[0].mxu0
        %v588 = vpop.f32.mrb[0].mxu0
        %589 = vdwg.mxu0
        %v590 = vadd.f32 %v545, %v585
        %592 = vrot.lane.b32.xlu0 %v590, 32
        %v593 = vpop.permute.xlu0 %592
        %vm595 = vcmask 523520
        %596 = vst.msk [vmem:[%s210] sm:$0xff] %vm595, %v593
        %597 = vset.pattern.permute.xlu0 9
        %598 = vperm.xlu0 %597, %v246
        %v599 = vpop.permute.xlu0 %598
        %vm600 = vcmp.eq.s32.totalorder %v599, %v245
        %v601 = vsel %vm600, 1, 0
        %v602 = vcvt.s32.f32 %v601
        %v603 = vpack.c.bf16 %v602, %v602
        %v605 = vsel %vm277, %v603, 0
        %607 = vmatprep.subr.bf16.mxu0 0
        %608 = vmatpush1.bf16.msra.mxu0 %v270
        %609 = vmatprep.subr.bf16.mxu0 0
        %610 = vmatpush1.bf16.msra.mxu0 %v271
        %611 = vmatprep.subr.bf16.mxu0 0
        %612 = vmatpush1.bf16.msra.mxu0 %v272
        %613 = vmatprep.subr.bf16.mxu0 0
        %614 = vmatpush1.bf16.msra.mxu0 %v283
        %615 = vmatprep.subr.bf16.mxu0 0
        %616 = vmatpush1.bf16.msra.mxu0 0
        %617 = vmatprep.subr.bf16.mxu0 0
        %618 = vmatpush1.bf16.msra.mxu0 0
        %619 = vmatprep.subr.bf16.mxu0 0
        %620 = vmatpush1.bf16.msra.mxu0 0
        %621 = vmatprep.subr.bf16.mxu0 0
        %622 = vmatpush1.bf16.msra.mxu0 0
        %623 = vmatprep.subr.bf16.mxu0 0
        %624 = vmatpush1.bf16.msra.mxu0 0
        %625 = vmatprep.subr.bf16.mxu0 0
        %626 = vmatpush1.bf16.msra.mxu0 0
        %627 = vmatprep.subr.bf16.mxu0 0
        %628 = vmatpush1.bf16.msra.mxu0 0
        %629 = vmatprep.subr.bf16.mxu0 0
        %630 = vmatpush1.bf16.msra.mxu0 0
        %631 = vmatprep.subr.bf16.mxu0 0
        %632 = vmatpush1.bf16.msra.mxu0 0
        %633 = vmatprep.subr.bf16.mxu0 0
        %634 = vmatpush1.bf16.msra.mxu0 0
        %635 = vmatprep.subr.bf16.mxu0 0
        %636 = vmatpush1.bf16.msra.mxu0 0
        %637 = vmatprep.subr.bf16.mxu0 0
        %638 = vmatpush1.bf16.msra.mxu0 0
        %639 = vmatprep.mubr.bf16.mxu0 0
        %640 = vmatmul.mubr.bf16.gmra.mrb[0].mxu0 %v605
        %v641 = vpop.f32.mrb[0].mxu0
        %v642 = vadd.f32 0.0, %v641
        %v643 = vpop.f32.mrb[0].mxu0
        %v644 = vpop.f32.mrb[0].mxu0
        %v645 = vpop.f32.mrb[0].mxu0
        %646 = vdwg.mxu0
        %647 = vmatprep.subr.bf16.mxu0 0
        %648 = vmatpush1.bf16.msra.mxu0 %v341
        %649 = vmatprep.subr.bf16.mxu0 0
        %650 = vmatpush1.bf16.msra.mxu0 %v342
        %651 = vmatprep.subr.bf16.mxu0 0
        %652 = vmatpush1.bf16.msra.mxu0 %v343
        %653 = vmatprep.subr.bf16.mxu0 0
        %654 = vmatpush1.bf16.msra.mxu0 %v349
        %655 = vmatprep.subr.bf16.mxu0 0
        %656 = vmatpush1.bf16.msra.mxu0 0
        %657 = vmatprep.subr.bf16.mxu0 0
        %658 = vmatpush1.bf16.msra.mxu0 0
        %659 = vmatprep.subr.bf16.mxu0 0
        %660 = vmatpush1.bf16.msra.mxu0 0
        %661 = vmatprep.subr.bf16.mxu0 0
        %662 = vmatpush1.bf16.msra.mxu0 0
        %663 = vmatprep.subr.bf16.mxu0 0
        %664 = vmatpush1.bf16.msra.mxu0 0
        %665 = vmatprep.subr.bf16.mxu0 0
        %666 = vmatpush1.bf16.msra.mxu0 0
        %667 = vmatprep.subr.bf16.mxu0 0
        %668 = vmatpush1.bf16.msra.mxu0 0
        %669 = vmatprep.subr.bf16.mxu0 0
        %670 = vmatpush1.bf16.msra.mxu0 0
        %671 = vmatprep.subr.bf16.mxu0 0
        %672 = vmatpush1.bf16.msra.mxu0 0
        %673 = vmatprep.subr.bf16.mxu0 0
        %674 = vmatpush1.bf16.msra.mxu0 0
        %675 = vmatprep.subr.bf16.mxu0 0
        %676 = vmatpush1.bf16.msra.mxu0 0
        %677 = vmatprep.subr.bf16.mxu0 0
        %678 = vmatpush1.bf16.msra.mxu0 0
        %679 = vmatprep.mubr.bf16.mxu0 0
        %680 = vmatmul.mubr.bf16.gmra.mrb[0].mxu0 %v605
        %v681 = vpop.f32.mrb[0].mxu0
        %v682 = vadd.f32 %v642, %v681
        %v683 = vpop.f32.mrb[0].mxu0
        %v684 = vpop.f32.mrb[0].mxu0
        %v685 = vpop.f32.mrb[0].mxu0
        %686 = vdwg.mxu0
        %687 = vmatprep.subr.bf16.mxu0 0
        %688 = vmatpush1.bf16.msra.mxu0 %v407
        %689 = vmatprep.subr.bf16.mxu0 0
        %690 = vmatpush1.bf16.msra.mxu0 %v408
        %691 = vmatprep.subr.bf16.mxu0 0
        %692 = vmatpush1.bf16.msra.mxu0 %v409
        %693 = vmatprep.subr.bf16.mxu0 0
        %694 = vmatpush1.bf16.msra.mxu0 %v415
        %695 = vmatprep.subr.bf16.mxu0 0
        %696 = vmatpush1.bf16.msra.mxu0 0
        %697 = vmatprep.subr.bf16.mxu0 0
        %698 = vmatpush1.bf16.msra.mxu0 0
        %699 = vmatprep.subr.bf16.mxu0 0
        %700 = vmatpush1.bf16.msra.mxu0 0
        %701 = vmatprep.subr.bf16.mxu0 0
        %702 = vmatpush1.bf16.msra.mxu0 0
        %703 = vmatprep.subr.bf16.mxu0 0
        %704 = vmatpush1.bf16.msra.mxu0 0
        %705 = vmatprep.subr.bf16.mxu0 0
        %706 = vmatpush1.bf16.msra.mxu0 0
        %707 = vmatprep.subr.bf16.mxu0 0
        %708 = vmatpush1.bf16.msra.mxu0 0
        %709 = vmatprep.subr.bf16.mxu0 0
        %710 = vmatpush1.bf16.msra.mxu0 0
        %711 = vmatprep.subr.bf16.mxu0 0
        %712 = vmatpush1.bf16.msra.mxu0 0
        %713 = vmatprep.subr.bf16.mxu0 0
        %714 = vmatpush1.bf16.msra.mxu0 0
        %715 = vmatprep.subr.bf16.mxu0 0
        %716 = vmatpush1.bf16.msra.mxu0 0
        %717 = vmatprep.subr.bf16.mxu0 0
        %718 = vmatpush1.bf16.msra.mxu0 0
        %719 = vmatprep.mubr.bf16.mxu0 0
        %720 = vmatmul.mubr.bf16.gmra.mrb[0].mxu0 %v605
        %v721 = vpop.f32.mrb[0].mxu0
        %v722 = vadd.f32 0.0, %v721
        %v723 = vpop.f32.mrb[0].mxu0
        %v724 = vpop.f32.mrb[0].mxu0
        %v725 = vpop.f32.mrb[0].mxu0
        %726 = vdwg.mxu0
        %v727 = vadd.f32 %v682, %v722
        %729 = vrot.lane.b32.xlu0 %v727, 64
        %v730 = vpop.permute.xlu0 %729
        %vm732 = vcmask 785920
        %733 = vst.msk [vmem:[%s210] sm:$0xff] %vm732, %v730
        %734 = vset.pattern.permute.xlu0 13
        %735 = vperm.xlu0 %734, %v246
        %v736 = vpop.permute.xlu0 %735
        %vm737 = vcmp.eq.s32.totalorder %v736, %v245
        %v738 = vsel %vm737, 1, 0
        %v739 = vcvt.s32.f32 %v738
        %v740 = vpack.c.bf16 %v739, %v739
        %v742 = vsel %vm277, %v740, 0
        %744 = vmatprep.subr.bf16.mxu0 0
        %745 = vmatpush1.bf16.msra.mxu0 %v270
        %746 = vmatprep.subr.bf16.mxu0 0
        %747 = vmatpush1.bf16.msra.mxu0 %v271
        %748 = vmatprep.subr.bf16.mxu0 0
        %749 = vmatpush1.bf16.msra.mxu0 %v272
        %750 = vmatprep.subr.bf16.mxu0 0
        %751 = vmatpush1.bf16.msra.mxu0 %v283
        %752 = vmatprep.subr.bf16.mxu0 0
        %753 = vmatpush1.bf16.msra.mxu0 0
        %754 = vmatprep.subr.bf16.mxu0 0
        %755 = vmatpush1.bf16.msra.mxu0 0
        %756 = vmatprep.subr.bf16.mxu0 0
        %757 = vmatpush1.bf16.msra.mxu0 0
        %758 = vmatprep.subr.bf16.mxu0 0
        %759 = vmatpush1.bf16.msra.mxu0 0
        %760 = vmatprep.subr.bf16.mxu0 0
        %761 = vmatpush1.bf16.msra.mxu0 0
        %762 = vmatprep.subr.bf16.mxu0 0
        %763 = vmatpush1.bf16.msra.mxu0 0
        %764 = vmatprep.subr.bf16.mxu0 0
        %765 = vmatpush1.bf16.msra.mxu0 0
        %766 = vmatprep.subr.bf16.mxu0 0
        %767 = vmatpush1.bf16.msra.mxu0 0
        %768 = vmatprep.subr.bf16.mxu0 0
        %769 = vmatpush1.bf16.msra.mxu0 0
        %770 = vmatprep.subr.bf16.mxu0 0
        %771 = vmatpush1.bf16.msra.mxu0 0
        %772 = vmatprep.subr.bf16.mxu0 0
        %773 = vmatpush1.bf16.msra.mxu0 0
        %774 = vmatprep.subr.bf16.mxu0 0
        %775 = vmatpush1.bf16.msra.mxu0 0
        %776 = vmatprep.mubr.bf16.mxu0 0
        %777 = vmatmul.mubr.bf16.gmra.mrb[0].mxu0 %v742
        %v778 = vpop.f32.mrb[0].mxu0
        %v779 = vadd.f32 0.0, %v778
        %v780 = vpop.f32.mrb[0].mxu0
        %v781 = vpop.f32.mrb[0].mxu0
        %v782 = vpop.f32.mrb[0].mxu0
        %783 = vdwg.mxu0
        %784 = vmatprep.subr.bf16.mxu0 0
        %785 = vmatpush1.bf16.msra.mxu0 %v341
        %786 = vmatprep.subr.bf16.mxu0 0
        %787 = vmatpush1.bf16.msra.mxu0 %v342
        %788 = vmatprep.subr.bf16.mxu0 0
        %789 = vmatpush1.bf16.msra.mxu0 %v343
        %790 = vmatprep.subr.bf16.mxu0 0
        %791 = vmatpush1.bf16.msra.mxu0 %v349
        %792 = vmatprep.subr.bf16.mxu0 0
        %793 = vmatpush1.bf16.msra.mxu0 0
        %794 = vmatprep.subr.bf16.mxu0 0
        %795 = vmatpush1.bf16.msra.mxu0 0
        %796 = vmatprep.subr.bf16.mxu0 0
        %797 = vmatpush1.bf16.msra.mxu0 0
        %798 = vmatprep.subr.bf16.mxu0 0
        %799 = vmatpush1.bf16.msra.mxu0 0
        %800 = vmatprep.subr.bf16.mxu0 0
        %801 = vmatpush1.bf16.msra.mxu0 0
        %802 = vmatprep.subr.bf16.mxu0 0
        %803 = vmatpush1.bf16.msra.mxu0 0
        %804 = vmatprep.subr.bf16.mxu0 0
        %805 = vmatpush1.bf16.msra.mxu0 0
        %806 = vmatprep.subr.bf16.mxu0 0
        %807 = vmatpush1.bf16.msra.mxu0 0
        %808 = vmatprep.subr.bf16.mxu0 0
        %809 = vmatpush1.bf16.msra.mxu0 0
        %810 = vmatprep.subr.bf16.mxu0 0
        %811 = vmatpush1.bf16.msra.mxu0 0
        %812 = vmatprep.subr.bf16.mxu0 0
        %813 = vmatpush1.bf16.msra.mxu0 0
        %814 = vmatprep.subr.bf16.mxu0 0
        %815 = vmatpush1.bf16.msra.mxu0 0
        %816 = vmatprep.mubr.bf16.mxu0 0
        %817 = vmatmul.mubr.bf16.gmra.mrb[0].mxu0 %v742
        %v818 = vpop.f32.mrb[0].mxu0
        %v819 = vadd.f32 %v779, %v818
        %v820 = vpop.f32.mrb[0].mxu0
        %v821 = vpop.f32.mrb[0].mxu0
        %v822 = vpop.f32.mrb[0].mxu0
        %823 = vdwg.mxu0
        %824 = vmatprep.subr.bf16.mxu0 0
        %825 = vmatpush1.bf16.msra.mxu0 %v407
        %826 = vmatprep.subr.bf16.mxu0 0
        %827 = vmatpush1.bf16.msra.mxu0 %v408
        %828 = vmatprep.subr.bf16.mxu0 0
        %829 = vmatpush1.bf16.msra.mxu0 %v409
        %830 = vmatprep.subr.bf16.mxu0 0
        %831 = vmatpush1.bf16.msra.mxu0 %v415
        %832 = vmatprep.subr.bf16.mxu0 0
        %833 = vmatpush1.bf16.msra.mxu0 0
        %834 = vmatprep.subr.bf16.mxu0 0
        %835 = vmatpush1.bf16.msra.mxu0 0
        %836 = vmatprep.subr.bf16.mxu0 0
        %837 = vmatpush1.bf16.msra.mxu0 0
        %838 = vmatprep.subr.bf16.mxu0 0
        %839 = vmatpush1.bf16.msra.mxu0 0
        %840 = vmatprep.subr.bf16.mxu0 0
        %841 = vmatpush1.bf16.msra.mxu0 0
        %842 = vmatprep.subr.bf16.mxu0 0
        %843 = vmatpush1.bf16.msra.mxu0 0
        %844 = vmatprep.subr.bf16.mxu0 0
        %845 = vmatpush1.bf16.msra.mxu0 0
        %846 = vmatprep.subr.bf16.mxu0 0
        %847 = vmatpush1.bf16.msra.mxu0 0
        %848 = vmatprep.subr.bf16.mxu0 0
        %849 = vmatpush1.bf16.msra.mxu0 0
        %850 = vmatprep.subr.bf16.mxu0 0
        %851 = vmatpush1.bf16.msra.mxu0 0
        %852 = vmatprep.subr.bf16.mxu0 0
        %853 = vmatpush1.bf16.msra.mxu0 0
        %854 = vmatprep.subr.bf16.mxu0 0
        %855 = vmatpush1.bf16.msra.mxu0 0
        %856 = vmatprep.mubr.bf16.mxu0 0
        %857 = vmatmul.mubr.bf16.gmra.mrb[0].mxu0 %v742
        %v858 = vpop.f32.mrb[0].mxu0
        %v859 = vadd.f32 0.0, %v858
        %v860 = vpop.f32.mrb[0].mxu0
        %v861 = vpop.f32.mrb[0].mxu0
        %v862 = vpop.f32.mrb[0].mxu0
        %863 = vdwg.mxu0
        %v864 = vadd.f32 %v819, %v859
        %866 = vrot.lane.b32.xlu0 %v864, 96
        %v867 = vpop.permute.xlu0 %866
        %vm869 = vcmask 1048320
        %870 = vst.msk [vmem:[%s210] sm:$0xff] %vm869, %v867
        %s871 = sand.u32 %s131, 1
        %s872 = scalar_lea.sflag [#allocation3], %s871
        %s873 = sand.u32 %s131, 1
        %s874 = smul.addr %s873, 8
        %s875 = scalar_lea.vmem [#allocation2], %s874
        // Predicated region
        $region37: #{tpu_custom_call.1} parent=35 // pred_check
          %p876 = pneg %p141
        $region38: #{tpu_custom_call.1} parent=35 // pred_check_branch
          %878 = sbr.rel (%p876) target = $region40
        $region39: #{tpu_custom_call.1} parent=35 // pred_region
          %s880 = ssub.s32 128, 128
          %881 = vsyncadd %s872, %s880
          %s882 = sadd.s32 %s23, %s22
          %s883 = smul.addr %s882, 128
          %s884 = scalar_lea.hbm %s4, %s883
          %s886 = sshll.u32 %s875, 4
          %s887 = int_to_ptr.vmem [resolvable:$true] %s886
          %889 = dma.vmem_to_hbm [thread:$0]  %s887, 128, %s884, %s872
        $region40: #{tpu_custom_call.1} parent=35 // pred_fallthru
          _
      $region36: #{tpu_custom_call.1} parent=5 // pred_fallthru
        _
      %p890 = scmp.le.s32.totalorder 2, %s13
      // Predicated region
      $region41: #{tpu_custom_call.1} parent=5 // pred_check
        %p891 = pneg %p890
      $region42: #{tpu_custom_call.1} parent=5 // pred_check_branch
        %893 = sbr.rel (%p891) target = $region44
      $region43: #{tpu_custom_call.1} parent=5 // pred_region
        %s894 = ssub.s32 %s13, 2
        // Predicated region
        $region45: #{tpu_custom_call.1} parent=43 // pred_check
          %p895 = pneg %p147
        $region46: #{tpu_custom_call.1} parent=43 // pred_check_branch
          %897 = sbr.rel (%p895) target = $region48
        $region47: #{tpu_custom_call.1} parent=43 // pred_region
          %s898 = sand.u32 %s132, 1
          %s899 = scalar_lea.sflag [#allocation3], %s898
          %s900 = sand.u32 %s132, 1
          %s901 = smul.addr %s900, 8
          %s902 = scalar_lea.vmem [#allocation2], %s901
          %903 = dma.done %s899, 128
        $region48: #{tpu_custom_call.1} parent=43 // pred_fallthru
          _
      $region44: #{tpu_custom_call.1} parent=5 // pred_fallthru
        _
    $region6: #{tpu_custom_call.1} parent=1 // loop_footer
      %s17 = sadd.s32 1, %s13
    $region7: #{tpu_custom_call.1} parent=1 // loop_footer_branch
      %12 = sbr.rel target = $region3
    $region8: #{tpu_custom_call.1} parent=1 // loop_exit
      _
    %904 = vsyncpa [#allocation3], 1
    %s905 = scalar_lea.sflag [#allocation3], 1
    %906 = vsyncpa %s905, 1

</llo_original>
